<compile_context>
chip_gen: v6e
topology: v6e:2x2x1
jax: 0.10.0
libtpu: 0.0.40
codegen_flags: <defaults>
</compile_context>

<pallas_src>
import functools

import jax
import jax.numpy as jnp
from jax.experimental import pallas as pl
from jax.experimental.pallas import tpu as pltpu


# ----------------------------------------------------------------------------
# Parameter packing (runs ONCE at init time, not per forward call)
# ----------------------------------------------------------------------------
def pack_params(params):
    """Pack every layer's Conv/BN parameters into ONE (rows, 128) f32 slab.

    Per-layer block of pad8(Cout) rows x 128 lanes:
      lanes [0, K*Cin)   : im2col weight  W_row[co, t*Cin + ci] = w[co, ci, t]
      lane  K*Cin        : BN gamma
      lane  K*Cin + 1    : BN beta
    The conv bias is intentionally dropped: under batch-statistic BN it is
    exactly cancelled by the mean subtraction.

    Returns (slab, meta) where meta is a static tuple of
    (row_offset, cout, cin, k) per layer.
    """
    blocks, meta, row = [], [], 0
    for (w, _b, gamma, beta) in params:
        cout, cin, k = w.shape                       # PyTorch (Cout, Cin, K)
        kcin = k * cin
        assert kcin + 2 <= 128, "layer too wide for a single 128-lane slab row"
        blk_rows = -(-cout // 8) * 8                 # pad rows to sublane tile
        w_row = jnp.transpose(w, (0, 2, 1)).reshape(cout, kcin).astype(jnp.float32)
        blk = jnp.zeros((blk_rows, 128), jnp.float32)
        blk = blk.at[:cout, :kcin].set(w_row)
        blk = blk.at[:cout, kcin].set(gamma.astype(jnp.float32))
        blk = blk.at[:cout, kcin + 1].set(beta.astype(jnp.float32))
        blocks.append(blk)
        meta.append((row, cout, cin, k))
        row += blk_rows
    return jnp.concatenate(blocks, axis=0), tuple(meta)


# ----------------------------------------------------------------------------
# Fused kernel: whole Conv1d+BN+ReLU stack in one invocation
# ----------------------------------------------------------------------------
def _fused_embedding_kernel(x_ref, slab_ref, o_ref, *, n, meta, eps):
    """x_ref: (N, Cin0, L0) f32 NCL; slab_ref: (R, 128) f32; o_ref: (N, Cf, Lf).

    Activations stay channels-first (C, L) per sample, live as values (vregs);
    the output ref is written exactly once per sample at the end.
    """
    acts = [x_ref[s] for s in range(n)]                       # each (Cin, L)

    for (off, cout, cin, k) in meta:
        kcin = k * cin
        l_in = acts[0].shape[1]
        lout = l_in - k + 1

        # Per-layer parameter slices from the single slab (static offsets).
        w_row = slab_ref[off:off + cout, 0:kcin]              # (Cout, K*Cin)
        gamma = slab_ref[off:off + cout, kcin:kcin + 1]       # (Cout, 1)
        beta = slab_ref[off:off + cout, kcin + 1:kcin + 2]    # (Cout, 1)

        # im2col: stack the k shifted views along channels (sublanes) per
        # sample, then put the samples side by side along lanes, so the whole
        # layer's convolution is ONE MXU dot.
        cols = [jnp.concatenate([a[:, t:t + lout] for t in range(k)], axis=0)
                for a in acts]                                # each (K*Cin, Lout)
        conv = jnp.dot(w_row, jnp.concatenate(cols, axis=1),
                       preferred_element_type=jnp.float32)    # (Cout, N*Lout)

        # BatchNorm1d with batch statistics (training semantics), biased
        # variance, two-pass (centered) form.  Conv bias omitted: exactly
        # cancelled by the mean subtraction.
        mean = jnp.mean(conv, axis=1, keepdims=True)          # (Cout, 1)
        cen = conv - mean
        var = jnp.mean(cen * cen, axis=1, keepdims=True)      # (Cout, 1)
        scale = gamma * jax.lax.rsqrt(var + eps)              # (Cout, 1)
        shift = beta - mean * scale                           # (Cout, 1)

        act = jnp.maximum(conv * scale + shift, 0.0)          # ReLU
        acts = [act[:, s * lout:(s + 1) * lout] for s in range(n)]

    for s in range(n):                                        # single store each
        o_ref[s] = acts[s]                                    # (Cout, Lf) = NCL


# ----------------------------------------------------------------------------
# Wrapper: 2 inputs, no grid, whole-array VMEM blocks
# ----------------------------------------------------------------------------
def embedding_forward(x_ncl, slab, *, meta, eps=1e-5):
    """x_ncl: (N, Cin, L) PyTorch layout.  Returns (N, Cout, Lf) PyTorch layout."""
    n, c0, l0 = x_ncl.shape
    l_f, c_f = l0, c0
    for (_off, cout, _cin, k) in meta:
        l_f = l_f - (k - 1)
        c_f = cout

    kernel = functools.partial(_fused_embedding_kernel, n=n, meta=meta, eps=eps)
    out = pl.pallas_call(
        kernel,
        out_shape=jax.ShapeDtypeStruct((n, c_f, l_f), jnp.float32),
        in_specs=[pl.BlockSpec(memory_space=pltpu.MemorySpace.VMEM),
                  pl.BlockSpec(memory_space=pltpu.MemorySpace.VMEM)],
        out_specs=pl.BlockSpec(memory_space=pltpu.MemorySpace.VMEM),
    )(x_ncl.astype(jnp.float32), slab)
    # Dropout == identity (eval semantics).
    return out


# ----------------------------------------------------------------------------
# Synthetic params + pure-JAX reference (includes the conv bias, to prove the
# bias is a no-op under batch-stat BN)
# ----------------------------------------------------------------------------
def init_params(key, num_embedding_layers, nf1, nf2, nf3, nf4, kernel_size):
    """Deterministic synthetic parameters (shapes mirror the PyTorch __init__)."""
    filters = [2, nf1, nf2, nf3, nf4]
    params = []
    for layer in range(num_embedding_layers):
        cin, cout = filters[layer], filters[layer + 1]
        key, kw, kb, kg, kbe = jax.random.split(key, 5)
        w = 0.1 * jax.random.normal(kw, (cout, cin, kernel_size), jnp.float32)
        b = 0.05 * jax.random.normal(kb, (cout,), jnp.float32)
        gamma = 1.0 + 0.1 * jax.random.normal(kg, (cout,), jnp.float32)
        beta = 0.1 * jax.random.normal(kbe, (cout,), jnp.float32)
        params.append((w, b, gamma, beta))
    return params


def embedding_forward_ref(x_ncl, params, eps=1e-5):
    """Pure-JAX reference with the exact PyTorch training-mode math."""
    out = x_ncl.astype(jnp.float32)                           # (N, C, L)
    for (w, b, g, be) in params:
        cout, cin, k = w.shape
        lout = out.shape[2] - k + 1
        acc = jnp.zeros((out.shape[0], cout, lout), jnp.float32)
        for t in range(k):
            acc = acc + jnp.einsum('ncl,oc->nol', out[:, :, t:t + lout], w[:, :, t])
        acc = acc + b[None, :, None]
        mean = acc.mean(axis=(0, 2), keepdims=True)
        var = ((acc - mean) ** 2).mean(axis=(0, 2), keepdims=True)
        out = jnp.maximum((acc - mean) * jax.lax.rsqrt(var + eps)
                          * g[None, :, None] + be[None, :, None], 0.0)
    return out


if __name__ == "__main__":
    # Module config: 2 embedding layers, kernel_size=3 (input_length = 10 - 2*layers)
    num_embedding_layers = 2
    nf1, nf2, nf3, nf4 = 8, 16, 16, 16
    kernel_size = 3
    N, C_in, L = 2, 2, 10                 # PyTorch input (N, 2, 10)

    key = jax.random.PRNGKey(0)
    key, kx = jax.random.split(key)
    x = jax.random.normal(kx, (N, C_in, L), jnp.float32)
    params = init_params(key, num_embedding_layers, nf1, nf2, nf3, nf4, kernel_size)

    # Pack once at init time -> single parameter slab + static layout metadata.
    slab, meta = pack_params(params)

    fwd = jax.jit(functools.partial(embedding_forward, meta=meta, eps=1e-5))
    out = jax.block_until_ready(fwd(x, slab))

    ref = embedding_forward_ref(x, params)
    assert out.shape == (N, nf2, L - 2 * num_embedding_layers), out.shape
    assert jnp.allclose(out, ref, atol=1e-4, rtol=1e-4), "mismatch vs pure-JAX reference"

    print("KERNEL_OK")
</pallas_src>

<mosaic_0001>
module attributes {stable_mosaic.version = 11 : i64} {
  func.func @_fused_embedding_kernel(%arg0: memref<2x2x10xf32, #tpu.memory_space<vmem>>, %arg1: memref<24x128xf32, #tpu.memory_space<vmem>>, %arg2: memref<2x16x6xf32, #tpu.memory_space<vmem>>) attributes {dimension_semantics = [], scalar_prefetch = 0 : i64, scratch_operands = 0 : i64, tpu.core_type = #tpu.core_type<tc>} {
    %c0 = arith.constant 0 : index
    %c0_0 = arith.constant 0 : index
    %c0_1 = arith.constant 0 : index
    %0 = vector.load %arg0[%c0, %c0_0, %c0_1] : memref<2x2x10xf32, #tpu.memory_space<vmem>>, vector<1x2x10xf32>
    %1 = vector.shape_cast %0 : vector<1x2x10xf32> to vector<2x10xf32>
    %c1 = arith.constant 1 : index
    %c0_2 = arith.constant 0 : index
    %c0_3 = arith.constant 0 : index
    %2 = vector.load %arg0[%c1, %c0_2, %c0_3] : memref<2x2x10xf32, #tpu.memory_space<vmem>>, vector<1x2x10xf32>
    %3 = vector.shape_cast %2 : vector<1x2x10xf32> to vector<2x10xf32>
    %c0_4 = arith.constant 0 : index
    %c0_5 = arith.constant 0 : index
    %4 = vector.load %arg1[%c0_4, %c0_5] : memref<24x128xf32, #tpu.memory_space<vmem>>, vector<8x6xf32>
    %c0_6 = arith.constant 0 : index
    %c6 = arith.constant 6 : index
    %5 = vector.load %arg1[%c0_6, %c6] : memref<24x128xf32, #tpu.memory_space<vmem>>, vector<8x1xf32>
    %c0_7 = arith.constant 0 : index
    %c7 = arith.constant 7 : index
    %6 = vector.load %arg1[%c0_7, %c7] : memref<24x128xf32, #tpu.memory_space<vmem>>, vector<8x1xf32>
    %7 = vector.extract_strided_slice %1 {offsets = [0, 0], sizes = [2, 8], strides = [1, 1]} : vector<2x10xf32> to vector<2x8xf32>
    %8 = vector.extract_strided_slice %1 {offsets = [0, 1], sizes = [2, 8], strides = [1, 1]} : vector<2x10xf32> to vector<2x8xf32>
    %9 = vector.extract_strided_slice %1 {offsets = [0, 2], sizes = [2, 8], strides = [1, 1]} : vector<2x10xf32> to vector<2x8xf32>
    %10 = tpu.concatenate %7, %8, %9 in 0 : vector<2x8xf32>, vector<2x8xf32>, vector<2x8xf32> -> vector<6x8xf32>
    %11 = vector.extract_strided_slice %3 {offsets = [0, 0], sizes = [2, 8], strides = [1, 1]} : vector<2x10xf32> to vector<2x8xf32>
    %12 = vector.extract_strided_slice %3 {offsets = [0, 1], sizes = [2, 8], strides = [1, 1]} : vector<2x10xf32> to vector<2x8xf32>
    %13 = vector.extract_strided_slice %3 {offsets = [0, 2], sizes = [2, 8], strides = [1, 1]} : vector<2x10xf32> to vector<2x8xf32>
    %14 = tpu.concatenate %11, %12, %13 in 0 : vector<2x8xf32>, vector<2x8xf32>, vector<2x8xf32> -> vector<6x8xf32>
    %15 = tpu.concatenate %10, %14 in 1 : vector<6x8xf32>, vector<6x8xf32> -> vector<6x16xf32>
    %cst = arith.constant dense<0.000000e+00> : vector<8x16xf32>
    %16 = tpu.matmul %4, %15, %cst {dimension_numbers = #tpu.dot_dimension_numbers<[1], [0], [0], [1], [0, 0, 1, 1], [], []>} : vector<8x6xf32>, vector<6x16xf32>, vector<8x16xf32> -> vector<8x16xf32>
    %cst_8 = arith.constant dense<0.000000e+00> : vector<8xf32>
    %17 = vector.multi_reduction <add>, %16, %cst_8 [1] : vector<8x16xf32> to vector<8xf32>
    %18 = vector.shape_cast %17 : vector<8xf32> to vector<8x1xf32>
    %cst_9 = arith.constant 1.600000e+01 : f32
    %19 = vector.broadcast %cst_9 : f32 to vector<8x1xf32>
    %20 = arith.divf %18, %19 : vector<8x1xf32>
    %21 = vector.broadcast %20 : vector<8x1xf32> to vector<8x16xf32>
    %22 = arith.subf %16, %21 : vector<8x16xf32>
    %23 = arith.mulf %22, %22 : vector<8x16xf32>
    %cst_10 = arith.constant dense<0.000000e+00> : vector<8xf32>
    %24 = vector.multi_reduction <add>, %23, %cst_10 [1] : vector<8x16xf32> to vector<8xf32>
    %25 = vector.shape_cast %24 : vector<8xf32> to vector<8x1xf32>
    %cst_11 = arith.constant 1.600000e+01 : f32
    %26 = vector.broadcast %cst_11 : f32 to vector<8x1xf32>
    %27 = arith.divf %25, %26 : vector<8x1xf32>
    %cst_12 = arith.constant 9.99999974E-6 : f32
    %28 = vector.broadcast %cst_12 : f32 to vector<8x1xf32>
    %29 = arith.addf %27, %28 : vector<8x1xf32>
    %30 = math.rsqrt %29 : vector<8x1xf32>
    %31 = arith.mulf %5, %30 : vector<8x1xf32>
    %32 = arith.mulf %20, %31 : vector<8x1xf32>
    %33 = arith.subf %6, %32 : vector<8x1xf32>
    %34 = vector.broadcast %31 : vector<8x1xf32> to vector<8x16xf32>
    %35 = arith.mulf %16, %34 : vector<8x16xf32>
    %36 = vector.broadcast %33 : vector<8x1xf32> to vector<8x16xf32>
    %37 = arith.addf %35, %36 : vector<8x16xf32>
    %cst_13 = arith.constant 0.000000e+00 : f32
    %38 = vector.broadcast %cst_13 : f32 to vector<8x16xf32>
    %39 = arith.maximumf %37, %38 : vector<8x16xf32>
    %40 = vector.extract_strided_slice %39 {offsets = [0, 0], sizes = [8, 8], strides = [1, 1]} : vector<8x16xf32> to vector<8x8xf32>
    %41 = vector.extract_strided_slice %39 {offsets = [0, 8], sizes = [8, 8], strides = [1, 1]} : vector<8x16xf32> to vector<8x8xf32>
    %c8 = arith.constant 8 : index
    %c0_14 = arith.constant 0 : index
    %42 = vector.load %arg1[%c8, %c0_14] : memref<24x128xf32, #tpu.memory_space<vmem>>, vector<16x24xf32>
    %c8_15 = arith.constant 8 : index
    %c24 = arith.constant 24 : index
    %43 = vector.load %arg1[%c8_15, %c24] : memref<24x128xf32, #tpu.memory_space<vmem>>, vector<16x1xf32>
    %c8_16 = arith.constant 8 : index
    %c25 = arith.constant 25 : index
    %44 = vector.load %arg1[%c8_16, %c25] : memref<24x128xf32, #tpu.memory_space<vmem>>, vector<16x1xf32>
    %45 = vector.extract_strided_slice %40 {offsets = [0, 0], sizes = [8, 6], strides = [1, 1]} : vector<8x8xf32> to vector<8x6xf32>
    %46 = vector.extract_strided_slice %40 {offsets = [0, 1], sizes = [8, 6], strides = [1, 1]} : vector<8x8xf32> to vector<8x6xf32>
    %47 = vector.extract_strided_slice %40 {offsets = [0, 2], sizes = [8, 6], strides = [1, 1]} : vector<8x8xf32> to vector<8x6xf32>
    %48 = tpu.concatenate %45, %46, %47 in 0 : vector<8x6xf32>, vector<8x6xf32>, vector<8x6xf32> -> vector<24x6xf32>
    %49 = vector.extract_strided_slice %41 {offsets = [0, 0], sizes = [8, 6], strides = [1, 1]} : vector<8x8xf32> to vector<8x6xf32>
    %50 = vector.extract_strided_slice %41 {offsets = [0, 1], sizes = [8, 6], strides = [1, 1]} : vector<8x8xf32> to vector<8x6xf32>
    %51 = vector.extract_strided_slice %41 {offsets = [0, 2], sizes = [8, 6], strides = [1, 1]} : vector<8x8xf32> to vector<8x6xf32>
    %52 = tpu.concatenate %49, %50, %51 in 0 : vector<8x6xf32>, vector<8x6xf32>, vector<8x6xf32> -> vector<24x6xf32>
    %53 = tpu.concatenate %48, %52 in 1 : vector<24x6xf32>, vector<24x6xf32> -> vector<24x12xf32>
    %cst_17 = arith.constant dense<0.000000e+00> : vector<16x12xf32>
    %54 = tpu.matmul %42, %53, %cst_17 {dimension_numbers = #tpu.dot_dimension_numbers<[1], [0], [0], [1], [0, 0, 1, 1], [], []>} : vector<16x24xf32>, vector<24x12xf32>, vector<16x12xf32> -> vector<16x12xf32>
    %cst_18 = arith.constant dense<0.000000e+00> : vector<16xf32>
    %55 = vector.multi_reduction <add>, %54, %cst_18 [1] : vector<16x12xf32> to vector<16xf32>
    %56 = vector.shape_cast %55 : vector<16xf32> to vector<16x1xf32>
    %cst_19 = arith.constant 1.200000e+01 : f32
    %57 = vector.broadcast %cst_19 : f32 to vector<16x1xf32>
    %58 = arith.divf %56, %57 : vector<16x1xf32>
    %59 = vector.broadcast %58 : vector<16x1xf32> to vector<16x12xf32>
    %60 = arith.subf %54, %59 : vector<16x12xf32>
    %61 = arith.mulf %60, %60 : vector<16x12xf32>
    %cst_20 = arith.constant dense<0.000000e+00> : vector<16xf32>
    %62 = vector.multi_reduction <add>, %61, %cst_20 [1] : vector<16x12xf32> to vector<16xf32>
    %63 = vector.shape_cast %62 : vector<16xf32> to vector<16x1xf32>
    %cst_21 = arith.constant 1.200000e+01 : f32
    %64 = vector.broadcast %cst_21 : f32 to vector<16x1xf32>
    %65 = arith.divf %63, %64 : vector<16x1xf32>
    %cst_22 = arith.constant 9.99999974E-6 : f32
    %66 = vector.broadcast %cst_22 : f32 to vector<16x1xf32>
    %67 = arith.addf %65, %66 : vector<16x1xf32>
    %68 = math.rsqrt %67 : vector<16x1xf32>
    %69 = arith.mulf %43, %68 : vector<16x1xf32>
    %70 = arith.mulf %58, %69 : vector<16x1xf32>
    %71 = arith.subf %44, %70 : vector<16x1xf32>
    %72 = vector.broadcast %69 : vector<16x1xf32> to vector<16x12xf32>
    %73 = arith.mulf %54, %72 : vector<16x12xf32>
    %74 = vector.broadcast %71 : vector<16x1xf32> to vector<16x12xf32>
    %75 = arith.addf %73, %74 : vector<16x12xf32>
    %cst_23 = arith.constant 0.000000e+00 : f32
    %76 = vector.broadcast %cst_23 : f32 to vector<16x12xf32>
    %77 = arith.maximumf %75, %76 : vector<16x12xf32>
    %78 = vector.extract_strided_slice %77 {offsets = [0, 0], sizes = [16, 6], strides = [1, 1]} : vector<16x12xf32> to vector<16x6xf32>
    %79 = vector.extract_strided_slice %77 {offsets = [0, 6], sizes = [16, 6], strides = [1, 1]} : vector<16x12xf32> to vector<16x6xf32>
    %c0_24 = arith.constant 0 : index
    %c0_25 = arith.constant 0 : index
    %c0_26 = arith.constant 0 : index
    %80 = vector.load %arg2[%c0_24, %c0_25, %c0_26] : memref<2x16x6xf32, #tpu.memory_space<vmem>>, vector<1x16x6xf32>
    %81 = vector.shape_cast %80 : vector<1x16x6xf32> to vector<16x6xf32>
    %82 = vector.shape_cast %78 : vector<16x6xf32> to vector<1x16x6xf32>
    tpu.vector_store %arg2[%c0_24, %c0_25, %c0_26], %82 {strides = array<i32>} : memref<2x16x6xf32, #tpu.memory_space<vmem>>, vector<1x16x6xf32>,
    %c1_27 = arith.constant 1 : index
    %c0_28 = arith.constant 0 : index
    %c0_29 = arith.constant 0 : index
    %83 = vector.load %arg2[%c1_27, %c0_28, %c0_29] : memref<2x16x6xf32, #tpu.memory_space<vmem>>, vector<1x16x6xf32>
    %84 = vector.shape_cast %83 : vector<1x16x6xf32> to vector<16x6xf32>
    %85 = vector.shape_cast %79 : vector<16x6xf32> to vector<1x16x6xf32>
    tpu.vector_store %arg2[%c1_27, %c0_28, %c0_29], %85 {strides = array<i32>} : memref<2x16x6xf32, #tpu.memory_space<vmem>>, vector<1x16x6xf32>,
    return
  }
}

</mosaic_0001>

<llo_original>
// kernel: embedding_forward.1
$region0: #{embedding_forward.1}
  #allocation0 [shape = 'u32[]', space=smem, size = 0x4, offset = 0x4, fixed_abs, tag = 'smem constant byte address 0x4 - core index']
  #allocation1 [shape = 'u32[144,128]{1,0:T(1,128)}', space=vmem, size = 0x12000, scoped, tag = 'internal scratch']
  %s0 = inlined_call_operand.hbm [shape: f32[2,2,10], index: 0, kind: input, shape index: {}]
  %s1 = inlined_call_operand.hbm [shape: f32[24,128], index: 1, kind: input, shape index: {}]
  %s2 = inlined_call_operand.vmem [shape: f32[2,16,6], index: 2, kind: output, shape index: {}]
  %s3 = sld [smem:[#allocation0]]
  $region26: #{embedding_forward.1} parent=0
    _
  %s5 = ssub.s32 1, %s3
  %s6 = scalar_select 0, %s5, %s3
  $region1: #{embedding_forward.1} parent=0
    #allocation2 [shape = 'u8[2048]{0}', space=vmem, size = 0x800, scoped, tag = 'input window, operand 0, single buffered']
    #allocation3 [shape = 's32[1]{0}', space=sflag, size = 0x4, scoped, tag = 'scoped memory for embedding_forward.1']
    #allocation4 [shape = 'u8[12288]{0}', space=vmem, size = 0x3000, scoped, tag = 'input window, operand 1, single buffered']
    #allocation5 [shape = 's32[1]{0}', space=sflag, size = 0x4, scoped, tag = 'scoped memory for embedding_forward.1']
    %7 = vsyncpa [#allocation3], 0
    %8 = vsyncpa [#allocation5], 0
    // Predicated region
    $region2: #{embedding_forward.1} parent=1 // pred_check
      _
    $region3: #{embedding_forward.1} parent=1 // pred_check_branch
      %10 = sbr.rel (0) target = $region5
    $region4: #{embedding_forward.1} parent=1 // pred_region
      %s12 = ssub.s32 64, 64
      %13 = vsyncadd [#allocation3], %s12
      %s14 = sshll.u32 [#allocation2], 4
      %s15 = int_to_ptr.vmem [resolvable:$true] %s14
      %20 = dma.hbm_to_vmem [thread:$0]  %s0, 64, %s15, [#allocation3], 32, 32, 2
    $region5: #{embedding_forward.1} parent=1 // pred_fallthru
      _
    // Predicated region
    $region6: #{embedding_forward.1} parent=1 // pred_check
      _
    $region7: #{embedding_forward.1} parent=1 // pred_check_branch
      %22 = sbr.rel (0) target = $region9
    $region8: #{embedding_forward.1} parent=1 // pred_region
      %s24 = ssub.s32 384, 384
      %25 = vsyncadd [#allocation5], %s24
      %s26 = sshll.u32 [#allocation4], 4
      %s27 = int_to_ptr.vmem [resolvable:$true] %s26
      %32 = dma.hbm_to_vmem [thread:$0]  %s1, 384, %s27, [#allocation5], 128, 128, 8
    $region9: #{embedding_forward.1} parent=1 // pred_fallthru
      _
    // Predicated region
    $region10: #{embedding_forward.1} parent=1 // pred_check
      _
    $region11: #{embedding_forward.1} parent=1 // pred_check_branch
      %34 = sbr.rel (0) target = $region13
    $region12: #{embedding_forward.1} parent=1 // pred_region
      %35 = dma.done [#allocation3], 64
    $region13: #{embedding_forward.1} parent=1 // pred_fallthru
      _
    // Predicated region
    $region14: #{embedding_forward.1} parent=1 // pred_check
      _
    $region15: #{embedding_forward.1} parent=1 // pred_check_branch
      %37 = sbr.rel (0) target = $region17
    $region16: #{embedding_forward.1} parent=1 // pred_region
      %38 = dma.done [#allocation5], 384
    $region17: #{embedding_forward.1} parent=1 // pred_fallthru
      _
    %v39 = vld [vmem:[#allocation2] sm:$0x3]
    %s40 = scalar_lea.vmem [#allocation2], 2
    %v41 = vld [vmem:[%s40] sm:$0x3]
    %v42 = vld [vmem:[#allocation4] sm:$0xff]
    %v44 = vrot.slane %v39, 6
    %45 = vrot.lane.b32.xlu0 %v44, 127
    %v46 = vpop.permute.xlu0 %45
    %v48 = vrot.slane %v39, 4
    %49 = vrot.lane.b32.xlu0 %v48, 126
    %v50 = vpop.permute.xlu0 %49
    %vm52 = vcmask 1041408
    %v53 = vsel %vm52, %v39, %v46
    %vm54 = vcmask 1043456
    %v55 = vsel %vm54, %v53, %v50
    %v57 = vrot.slane %v41, 6
    %58 = vrot.lane.b32.xlu0 %v57, 127
    %v59 = vpop.permute.xlu0 %58
    %v61 = vrot.slane %v41, 4
    %62 = vrot.lane.b32.xlu0 %v61, 126
    %v63 = vpop.permute.xlu0 %62
    %v65 = vsel %vm52, %v41, %v59
    %v66 = vsel %vm54, %v65, %v63
    %68 = vrot.lane.b32.xlu0 %v66, 8
    %v69 = vpop.permute.xlu0 %68
    %vm71 = vcmask 64512
    %v72 = vsel %vm71, %v55, %v69
    %vm73 = vcmask 48128
    %v75 = vsel %vm73, %v42, 0
    %vm77 = vcmask 1045504
    %v79 = vsel %vm77, %v72, 0
    %81 = vmatprep.subr.mxu0 0.0
    %82 = vmatpush1.msra.mxu0 0.0
    %83 = vmatprep.subr.mxu0 0.0
    %84 = vmatpush1.msra.mxu0 0.0
    %85 = vmatprep.subr.mxu0 0.0
    %86 = vmatpush1.msra.mxu0 0.0
    %87 = vmatprep.subr.mxu0 0.0
    %88 = vmatpush1.msra.mxu0 0.0
    %89 = vmatprep.subr.mxu0 0.0
    %90 = vmatpush1.msra.mxu0 0.0
    %91 = vmatprep.subr.mxu0 0.0
    %92 = vmatpush1.msra.mxu0 0.0
    %93 = vmatprep.subr.mxu0 0.0
    %94 = vmatpush1.msra.mxu0 0.0
    %95 = vmatprep.subr.mxu0 0.0
    %96 = vmatpush1.msra.mxu0 0.0
    %97 = vmatprep.subr.mxu0 0.0
    %98 = vmatpush1.msra.mxu0 0.0
    %99 = vmatprep.subr.mxu0 0.0
    %100 = vmatpush1.msra.mxu0 0.0
    %101 = vmatprep.subr.mxu0 0.0
    %102 = vmatpush1.msra.mxu0 0.0
    %103 = vmatprep.subr.mxu0 0.0
    %104 = vmatpush1.msra.mxu0 0.0
    %105 = vmatprep.subr.mxu0 0.0
    %106 = vmatpush1.msra.mxu0 0.0
    %107 = vmatprep.subr.mxu0 0.0
    %108 = vmatpush1.msra.mxu0 0.0
    %109 = vmatprep.subr.mxu0 0.0
    %110 = vmatpush1.msra.mxu0 0.0
    %111 = vmatprep.subr.mxu0 0.0
    %112 = vmatpush1.msra.mxu0 %v79
    %113 = vmatprep.subr.mxu0 0.0
    %114 = vmatpush2.msra.mxu0 0.0
    %115 = vmatprep.subr.mxu0 0.0
    %116 = vmatpush2.msra.mxu0 0.0
    %117 = vmatprep.subr.mxu0 0.0
    %118 = vmatpush2.msra.mxu0 0.0
    %119 = vmatprep.subr.mxu0 0.0
    %120 = vmatpush2.msra.mxu0 0.0
    %121 = vmatprep.subr.mxu0 0.0
    %122 = vmatpush2.msra.mxu0 0.0
    %123 = vmatprep.subr.mxu0 0.0
    %124 = vmatpush2.msra.mxu0 0.0
    %125 = vmatprep.subr.mxu0 0.0
    %126 = vmatpush2.msra.mxu0 0.0
    %127 = vmatprep.subr.mxu0 0.0
    %128 = vmatpush2.msra.mxu0 0.0
    %129 = vmatprep.subr.mxu0 0.0
    %130 = vmatpush2.msra.mxu0 0.0
    %131 = vmatprep.subr.mxu0 0.0
    %132 = vmatpush2.msra.mxu0 0.0
    %133 = vmatprep.subr.mxu0 0.0
    %134 = vmatpush2.msra.mxu0 0.0
    %135 = vmatprep.subr.mxu0 0.0
    %136 = vmatpush2.msra.mxu0 0.0
    %137 = vmatprep.subr.mxu0 0.0
    %138 = vmatpush2.msra.mxu0 0.0
    %139 = vmatprep.subr.mxu0 0.0
    %140 = vmatpush2.msra.mxu0 0.0
    %141 = vmatprep.subr.mxu0 0.0
    %142 = vmatpush2.msra.mxu0 0.0
    %143 = vmatprep.subr.mxu0 0.0
    %144 = vmatpush2.msra.mxu0 0.0
    %145 = vmatprep.mubr.f32.mxu0 0.0
    %146 = vmatmul.mubr.f32.gmra.mxu0 %v75
    %v147 = vpop.f32.mrf.mxu0
    %v148 = vadd.f32 0.0, %v147
    %v149 = vpop.f32.mrf.mxu0
    %150 = vdwg.mxu0
    %vm151 = vcmask 130048
    %v152 = vsel %vm151, %v148, 0.0
    %153 = vadd.xlane.f32.xlu0 %v152
    %v154 = vpop.xlane.xlu0 %153
    %v155 = vrcp.pop 16.0
    %v156 = vmul.f32 %v154, %v155
    %v157 = vsub.f32 %v148, %v156
    %v158 = vmul.f32 %v157, %v157
    %v159 = vsel %vm151, %v158, 0.0
    %160 = vadd.xlane.f32.xlu0 %v159
    %v161 = vpop.xlane.xlu0 %160
    %v162 = vmul.f32 %v161, %v155
    %v163 = vadd.f32 %v162, 1e-05
    %v164 = vrsqrt.pop %v163
    %v165 = vmul.f32 %v42, %v164
    %v166 = vmul.f32 %v156, %v165
    %168 = vrot.lane.b32.xlu0 %v166, 1
    %v169 = vpop.permute.xlu0 %168
    %v171 = vsub.f32 %v42, %v169
    %173 = vset.pattern.permute.xlu0 6
    %174 = vperm.xlu0 %173, %v165
    %v175 = vpop.permute.xlu0 %174
    %v177 = vmul.f32 %v148, %v175
    %179 = vset.pattern.permute.xlu0 7
    %180 = vperm.xlu0 %179, %v171
    %v181 = vpop.permute.xlu0 %180
    %v183 = vadd.f32 %v177, %v181
    %v184 = vmax.f32 %v183, 0.0
    %v185 = vld [vmem:[#allocation4 + $0x8] sm:$0xff]
    %v186 = vld [vmem:[#allocation4 + $0x10] sm:$0xff]
    %188 = vrot.lane.b32.xlu0 %v184, 127
    %v189 = vpop.permute.xlu0 %188
    %191 = vrot.lane.b32.xlu0 %v184, 126
    %v192 = vpop.permute.xlu0 %191
    %194 = vrot.lane.b32.xlu0 %v189, 126
    %v195 = vpop.permute.xlu0 %194
    %196 = vrot.lane.b32.xlu0 %v192, 126
    %v197 = vpop.permute.xlu0 %196
    %v200 = vsel %vm73, %v184, %v192
    %v201 = vsel %vm73, %v189, %v195
    %v202 = vsel %vm73, %v192, %v197
    %vm203 = vcmask 195584
    %v205 = vsel %vm203, %v185, 0
    %v208 = vsel %vm203, %v186, 0
    %210 = vmatprep.subr.mxu0 0.0
    %211 = vmatpush1.msra.mxu0 0.0
    %212 = vmatprep.subr.mxu0 0.0
    %213 = vmatpush1.msra.mxu0 0.0
    %214 = vmatprep.subr.mxu0 0.0
    %215 = vmatpush1.msra.mxu0 0.0
    %216 = vmatprep.subr.mxu0 0.0
    %217 = vmatpush1.msra.mxu0 0.0
    %218 = vmatprep.subr.mxu0 0.0
    %219 = vmatpush1.msra.mxu0 0.0
    %220 = vmatprep.subr.mxu0 0.0
    %221 = vmatpush1.msra.mxu0 0.0
    %222 = vmatprep.subr.mxu0 0.0
    %223 = vmatpush1.msra.mxu0 0.0
    %224 = vmatprep.subr.mxu0 0.0
    %225 = vmatpush1.msra.mxu0 0.0
    %226 = vmatprep.subr.mxu0 0.0
    %227 = vmatpush1.msra.mxu0 0.0
    %228 = vmatprep.subr.mxu0 0.0
    %229 = vmatpush1.msra.mxu0 0.0
    %230 = vmatprep.subr.mxu0 0.0
    %231 = vmatpush1.msra.mxu0 0.0
    %232 = vmatprep.subr.mxu0 0.0
    %233 = vmatpush1.msra.mxu0 0.0
    %234 = vmatprep.subr.mxu0 0.0
    %235 = vmatpush1.msra.mxu0 0.0
    %236 = vmatprep.subr.mxu0 0.0
    %237 = vmatpush1.msra.mxu0 %v202
    %238 = vmatprep.subr.mxu0 0.0
    %239 = vmatpush1.msra.mxu0 %v201
    %240 = vmatprep.subr.mxu0 0.0
    %241 = vmatpush1.msra.mxu0 %v200
    %242 = vmatprep.subr.mxu0 0.0
    %243 = vmatpush2.msra.mxu0 0.0
    %244 = vmatprep.subr.mxu0 0.0
    %245 = vmatpush2.msra.mxu0 0.0
    %246 = vmatprep.subr.mxu0 0.0
    %247 = vmatpush2.msra.mxu0 0.0
    %248 = vmatprep.subr.mxu0 0.0
    %249 = vmatpush2.msra.mxu0 0.0
    %250 = vmatprep.subr.mxu0 0.0
    %251 = vmatpush2.msra.mxu0 0.0
    %252 = vmatprep.subr.mxu0 0.0
    %253 = vmatpush2.msra.mxu0 0.0
    %254 = vmatprep.subr.mxu0 0.0
    %255 = vmatpush2.msra.mxu0 0.0
    %256 = vmatprep.subr.mxu0 0.0
    %257 = vmatpush2.msra.mxu0 0.0
    %258 = vmatprep.subr.mxu0 0.0
    %259 = vmatpush2.msra.mxu0 0.0
    %260 = vmatprep.subr.mxu0 0.0
    %261 = vmatpush2.msra.mxu0 0.0
    %262 = vmatprep.subr.mxu0 0.0
    %263 = vmatpush2.msra.mxu0 0.0
    %264 = vmatprep.subr.mxu0 0.0
    %265 = vmatpush2.msra.mxu0 0.0
    %266 = vmatprep.subr.mxu0 0.0
    %267 = vmatpush2.msra.mxu0 0.0
    %268 = vmatprep.subr.mxu0 0.0
    %269 = vmatpush2.msra.mxu0 0.0
    %270 = vmatprep.subr.mxu0 0.0
    %271 = vmatpush2.msra.mxu0 0.0
    %272 = vmatprep.subr.mxu0 0.0
    %273 = vmatpush2.msra.mxu0 0.0
    %274 = vmatprep.mubr.f32.mxu0 0.0
    %275 = vmatmul.mubr.f32.gmra.mxu0 %v205
    %v276 = vpop.f32.mrf.mxu0
    %v277 = vadd.f32 0.0, %v276
    %v278 = vpop.f32.mrf.mxu0
    %279 = vmatprep.mubr.f32.mxu0 0.0
    %280 = vmatmul.mubr.f32.gmra.mxu0 %v208
    %v281 = vpop.f32.mrf.mxu0
    %v282 = vadd.f32 0.0, %v281
    %v283 = vpop.f32.mrf.mxu0
    %284 = vdwg.mxu0
    %vm285 = vcmask 97280
    %v286 = vsel %vm285, %v277, 0.0
    %287 = vadd.xlane.f32.xlu0 %v286
    %v288 = vpop.xlane.xlu0 %287
    %v289 = vsel %vm285, %v282, 0.0
    %290 = vadd.xlane.f32.xlu0 %v289
    %v291 = vpop.xlane.xlu0 %290
    %v292 = vrcp.pop 12.0
    %v293 = vmul.f32 %v288, %v292
    %v294 = vmul.f32 %v291, %v292
    %v295 = vsub.f32 %v277, %v293
    %v296 = vsub.f32 %v282, %v294
    %v297 = vmul.f32 %v295, %v295
    %v298 = vmul.f32 %v296, %v296
    %v299 = vsel %vm285, %v297, 0.0
    %300 = vadd.xlane.f32.xlu0 %v299
    %v301 = vpop.xlane.xlu0 %300
    %v302 = vsel %vm285, %v298, 0.0
    %303 = vadd.xlane.f32.xlu0 %v302
    %v304 = vpop.xlane.xlu0 %303
    %v305 = vmul.f32 %v301, %v292
    %v306 = vmul.f32 %v304, %v292
    %v307 = vadd.f32 %v305, 1e-05
    %v308 = vadd.f32 %v306, 1e-05
    %v309 = vrsqrt.pop %v307
    %v310 = vrsqrt.pop %v308
    %v311 = vmul.f32 %v185, %v309
    %v312 = vmul.f32 %v186, %v310
    %v313 = vmul.f32 %v293, %v311
    %v314 = vmul.f32 %v294, %v312
    %317 = vrot.lane.b32.xlu0 %v313, 1
    %v318 = vpop.permute.xlu0 %317
    %319 = vrot.lane.b32.xlu0 %v314, 1
    %v320 = vpop.permute.xlu0 %319
    %v323 = vsub.f32 %v185, %v318
    %v324 = vsub.f32 %v186, %v320
    %326 = vset.pattern.permute.xlu0 24
    %327 = vperm.xlu0 %326, %v311
    %v328 = vpop.permute.xlu0 %327
    %331 = vset.pattern.permute.xlu0 24
    %332 = vperm.xlu0 %331, %v312
    %v333 = vpop.permute.xlu0 %332
    %v335 = vmul.f32 %v277, %v328
    %v336 = vmul.f32 %v282, %v333
    %338 = vset.pattern.permute.xlu0 25
    %339 = vperm.xlu0 %338, %v323
    %v340 = vpop.permute.xlu0 %339
    %343 = vset.pattern.permute.xlu0 25
    %344 = vperm.xlu0 %343, %v324
    %v345 = vpop.permute.xlu0 %344
    %v347 = vadd.f32 %v335, %v340
    %v348 = vadd.f32 %v336, %v345
    %v349 = vmax.f32 %v347, 0.0
    %v350 = vmax.f32 %v348, 0.0
    %351 = vst.msk [vmem:[%s2] sm:$0xff] %vm73, %v349
    %352 = vst.msk [vmem:[%s2 + $0x8] sm:$0xff] %vm73, %v350
    %355 = vrot.lane.b32.xlu0 %v349, 122
    %v356 = vpop.permute.xlu0 %355
    %357 = vrot.lane.b32.xlu0 %v350, 122
    %v358 = vpop.permute.xlu0 %357
    %s361 = scalar_lea.vmem %s2, 16
    %362 = vst.msk [vmem:[%s361] sm:$0xff] %vm73, %v356
    %363 = vst.msk [vmem:[%s361 + $0x8] sm:$0xff] %vm73, %v358
    // Predicated region
    $region18: #{embedding_forward.1} parent=1 // pred_check
      _
    $region19: #{embedding_forward.1} parent=1 // pred_check_branch
      %365 = sbr.rel (0) target = $region21
    $region20: #{embedding_forward.1} parent=1 // pred_region
      _
    $region21: #{embedding_forward.1} parent=1 // pred_fallthru
      _
    // Predicated region
    $region22: #{embedding_forward.1} parent=1 // pred_check
      _
    $region23: #{embedding_forward.1} parent=1 // pred_check_branch
      %367 = sbr.rel (0) target = $region25
    $region24: #{embedding_forward.1} parent=1 // pred_region
      _
    $region25: #{embedding_forward.1} parent=1 // pred_fallthru
      _
    %368 = vsyncpa [#allocation3], 1
    %369 = vsyncpa [#allocation5], 1

</llo_original>
